<compile_context>
chip_gen: v5e
topology: v5e:2x2
jax: 0.10.0
libtpu: 0.0.40
codegen_flags: <defaults>
</compile_context>

<pallas_src>
import functools

import jax
import jax.numpy as jnp
from jax.experimental import pallas as pl
from jax.experimental.pallas import tpu as pltpu

H0_REAL, H1_REAL = 100, 50     # real fc0 / fc1 output features
H0_PAD, H1_PAD = 128, 128      # lane-padded widths (multiples of 128)


def firstnet_kernel(x_ref, w0_ref, b0_ref, w1_ref, b1_ref, out_ref, *, h1_real):
    # x_ref:  (TILE_B, D)        f32    (streamed per grid step, cast to bf16 in-kernel)
    # w0_ref: (D, H0_PAD)        bf16   (resident)
    # b0_ref: (1, H0_PAD)        f32    (resident)
    # w1_ref: (H0_PAD, H1_PAD)   bf16   (resident)
    # b1_ref: (1, H1_PAD)        f32    (resident)
    # out_ref:(TILE_B, H1_PAD)   f32
    x = x_ref[...].astype(jnp.bfloat16)   # cast on the VPU, right before the MXU matmul

    # fc0 + ReLU  (bf16 MXU matmul, f32 accumulation; padded lanes stay 0 after ReLU)
    h0 = jnp.dot(x, w0_ref[...], preferred_element_type=jnp.float32) + b0_ref[...]
    h0 = jnp.maximum(h0, 0.0)

    # fc1 + ReLU
    h1 = jnp.dot(h0.astype(jnp.bfloat16), w1_ref[...],
                 preferred_element_type=jnp.float32) + b1_ref[...]
    h1 = jnp.maximum(h1, 0.0)

    # log_softmax over the first h1_real lanes only; padded lanes masked to -inf so they
    # contribute nothing to the max or the logsumexp (exp(-inf) = 0).
    lane = jax.lax.broadcasted_iota(jnp.int32, (1, H1_PAD), 1)   # (1,128), broadcast below
    valid = lane < h1_real
    h1 = jnp.where(valid, h1, -jnp.inf)
    m = jnp.max(h1, axis=-1, keepdims=True)
    s = h1 - m
    lse = jnp.log(jnp.sum(jnp.exp(s), axis=-1, keepdims=True))
    out_ref[...] = jnp.where(valid, s - lse, 0.0).astype(out_ref.dtype)


def _round_up(n, m):
    return (n + m - 1) // m * m


def _choose_tile_b(batch, tile_b_max):
    """Multiple of 8 (f32 sublane); aim for >=2 grid steps so v7x megacore can split."""
    b8 = _round_up(batch, 8)
    target = _round_up(pl.cdiv(b8, 2), 8) if b8 >= 16 else b8
    return max(8, min(tile_b_max, target))


def make_firstnet_params(w0, b0, w1, b1):
    """One-time weight/bias lane-padding + bf16 cast, hoisted out of the forward path.

    Zero-padding is numerically a no-op: ReLU(0)=0, zero rows/cols of w1/b1 contribute
    nothing, and padded output lanes are masked inside the kernel.
    """
    D = w0.shape[0]
    w0p = jnp.zeros((D, H0_PAD), jnp.bfloat16).at[:, :H0_REAL].set(w0.astype(jnp.bfloat16))
    b0p = jnp.zeros((1, H0_PAD), jnp.float32).at[:, :H0_REAL].set(
        b0.reshape(1, -1).astype(jnp.float32))
    w1p = jnp.zeros((H0_PAD, H1_PAD), jnp.bfloat16).at[:H0_REAL, :H1_REAL].set(
        w1.astype(jnp.bfloat16))
    b1p = jnp.zeros((1, H1_PAD), jnp.float32).at[:, :H1_REAL].set(
        b1.reshape(1, -1).astype(jnp.float32))
    return w0p, b0p, w1p, b1p


def firstnet_forward(x, params, image_size, *, tile_b_max=2048):
    w0p, b0p, w1p, b1p = params

    # x.view(-1, image_size) -- reshape of a contiguous array is metadata-only.
    x2d = x.reshape(-1, image_size)
    B, D = x2d.shape

    tile_b = _choose_tile_b(B, tile_b_max)
    grid = (pl.cdiv(B, tile_b),)   # ragged last tile handled by Pallas boundary blocks

    flops = 2 * B * D * H0_PAD + 2 * B * H0_PAD * H1_PAD
    bytes_accessed = (B * D * 4                      # x read (f32, once)
                      + w0p.size * 2 + w1p.size * 2  # resident bf16 weights
                      + b0p.size * 4 + b1p.size * 4
                      + B * H1_PAD * 4)              # f32 output slab

    out_slab = pl.pallas_call(
        functools.partial(firstnet_kernel, h1_real=H1_REAL),
        out_shape=jax.ShapeDtypeStruct((B, H1_PAD), jnp.float32),
        grid=grid,
        in_specs=[
            pl.BlockSpec((tile_b, D), lambda i: (i, 0)),        # x: streamed, double-buffered
            pl.BlockSpec((D, H0_PAD), lambda i: (0, 0)),        # weights: VMEM-resident
            pl.BlockSpec((1, H0_PAD), lambda i: (0, 0)),
            pl.BlockSpec((H0_PAD, H1_PAD), lambda i: (0, 0)),
            pl.BlockSpec((1, H1_PAD), lambda i: (0, 0)),
        ],
        out_specs=pl.BlockSpec((tile_b, H1_PAD), lambda i: (i, 0)),
        compiler_params=pltpu.CompilerParams(
            dimension_semantics=("parallel",),   # batch tiles independent -> megacore on v7x
            vmem_limit_bytes=48 << 20,           # fits v7x 64 MiB; overrides v5e 16 MiB default
        ),
        cost_estimate=pl.CostEstimate(
            flops=flops,
            transcendentals=B * (H1_PAD + 1),
            bytes_accessed=bytes_accessed,
        ),
    )(x2d, w0p, b0p, w1p, b1p)

    # Drop the padded output lanes (tiny: 50 of 128 lanes).
    return out_slab[:, :H1_REAL]


if __name__ == "__main__":
    key = jax.random.PRNGKey(0)
    kx, kp = jax.random.split(key)

    # Small NCHW-like input: (2, 4, 16, 16) -> flattened image_size = 4*16*16 = 1024
    x = jax.random.normal(kx, (2, 4, 16, 16), dtype=jnp.float32)
    image_size = 4 * 16 * 16

    # PyTorch nn.Linear default-style init: U(-1/sqrt(fan_in), 1/sqrt(fan_in))
    k0, k1, k2, k3 = jax.random.split(kp, 4)
    lim0 = 1.0 / jnp.sqrt(jnp.float32(image_size))
    lim1 = 1.0 / jnp.sqrt(jnp.float32(100.0))
    w0 = jax.random.uniform(k0, (image_size, 100), jnp.float32, -lim0, lim0)
    b0 = jax.random.uniform(k1, (100,), jnp.float32, -lim0, lim0)
    w1 = jax.random.uniform(k2, (100, 50), jnp.float32, -lim1, lim1)
    b1 = jax.random.uniform(k3, (50,), jnp.float32, -lim1, lim1)

    # One-time param prep (outside the per-call forward path).
    params = make_firstnet_params(w0, b0, w1, b1)

    out = firstnet_forward(x, params, image_size)
    out = jax.block_until_ready(out)

    # Reference matching the kernel's bf16-matmul / f32-accumulate recipe.
    # TODO(synk): bf16 MXU inputs differ from a pure-f32 PyTorch FirstNet by ~1e-3.
    x2d = x.reshape(-1, image_size)
    h0 = jnp.maximum(
        jnp.dot(x2d.astype(jnp.bfloat16), w0.astype(jnp.bfloat16),
                preferred_element_type=jnp.float32) + b0, 0.0)
    h1 = jnp.maximum(
        jnp.dot(h0.astype(jnp.bfloat16), w1.astype(jnp.bfloat16),
                preferred_element_type=jnp.float32) + b1, 0.0)
    ref = jax.nn.log_softmax(h1, axis=1)

    assert out.shape == (2, 50)
    assert bool(jnp.allclose(out, ref, atol=2e-3, rtol=2e-3)), \
        float(jnp.max(jnp.abs(out - ref)))

    print("KERNEL_OK")
</pallas_src>

<mosaic_0001>
module attributes {stable_mosaic.version = 11 : i64} {
  func.func @firstnet_kernel(%arg0: i32, %arg1: memref<8x1024xf32, #tpu.memory_space<vmem>>, %arg2: memref<1024x128xbf16, #tpu.memory_space<vmem>>, %arg3: memref<1x128xf32, #tpu.memory_space<vmem>>, %arg4: memref<128x128xbf16, #tpu.memory_space<vmem>>, %arg5: memref<1x128xf32, #tpu.memory_space<vmem>>, %arg6: memref<8x128xf32, #tpu.memory_space<vmem>>) attributes {dimension_semantics = [#tpu.dimension_semantics<parallel>], iteration_bounds = array<i64: 1>, scalar_prefetch = 0 : i64, scratch_operands = 0 : i64, tpu.core_type = #tpu.core_type<tc>, window_params = [{transform_indices = @transform_0, window_bounds = array<i64: 8, 1024>}, {pipeline_mode = #tpu.pipeline_mode<synchronous>, transform_indices = @transform_1, window_bounds = array<i64: 1024, 128>}, {pipeline_mode = #tpu.pipeline_mode<synchronous>, transform_indices = @transform_2, window_bounds = array<i64: 1, 128>}, {pipeline_mode = #tpu.pipeline_mode<synchronous>, transform_indices = @transform_3, window_bounds = array<i64: 128, 128>}, {pipeline_mode = #tpu.pipeline_mode<synchronous>, transform_indices = @transform_4, window_bounds = array<i64: 1, 128>}, {transform_indices = @transform_5, window_bounds = array<i64: 8, 128>}]} {
    %c0 = arith.constant 0 : index
    %c0_0 = arith.constant 0 : index
    %0 = vector.load %arg1[%c0, %c0_0] : memref<8x1024xf32, #tpu.memory_space<vmem>>, vector<8x1024xf32>
    %1 = arith.truncf %0 : vector<8x1024xf32> to vector<8x1024xbf16>
    %c0_1 = arith.constant 0 : index
    %c0_2 = arith.constant 0 : index
    %2 = vector.load %arg2[%c0_1, %c0_2] : memref<1024x128xbf16, #tpu.memory_space<vmem>>, vector<1024x128xbf16>
    %cst = arith.constant dense<0.000000e+00> : vector<8x128xf32>
    %3 = tpu.matmul %1, %2, %cst {dimension_numbers = #tpu.dot_dimension_numbers<[1], [0], [0], [1], [0, 0, 1, 1], [], []>} : vector<8x1024xbf16>, vector<1024x128xbf16>, vector<8x128xf32> -> vector<8x128xf32>
    %c0_3 = arith.constant 0 : index
    %c0_4 = arith.constant 0 : index
    %4 = vector.load %arg3[%c0_3, %c0_4] : memref<1x128xf32, #tpu.memory_space<vmem>>, vector<1x128xf32>
    %5 = vector.broadcast %4 : vector<1x128xf32> to vector<8x128xf32>
    %6 = arith.addf %3, %5 : vector<8x128xf32>
    %cst_5 = arith.constant 0.000000e+00 : f32
    %7 = vector.broadcast %cst_5 : f32 to vector<8x128xf32>
    %8 = arith.maximumf %6, %7 : vector<8x128xf32>
    %9 = arith.truncf %8 : vector<8x128xf32> to vector<8x128xbf16>
    %c0_6 = arith.constant 0 : index
    %c0_7 = arith.constant 0 : index
    %10 = vector.load %arg4[%c0_6, %c0_7] : memref<128x128xbf16, #tpu.memory_space<vmem>>, vector<128x128xbf16>
    %cst_8 = arith.constant dense<0.000000e+00> : vector<8x128xf32>
    %11 = tpu.matmul %9, %10, %cst_8 {dimension_numbers = #tpu.dot_dimension_numbers<[1], [0], [0], [1], [0, 0, 1, 1], [], []>} : vector<8x128xbf16>, vector<128x128xbf16>, vector<8x128xf32> -> vector<8x128xf32>
    %c0_9 = arith.constant 0 : index
    %c0_10 = arith.constant 0 : index
    %12 = vector.load %arg5[%c0_9, %c0_10] : memref<1x128xf32, #tpu.memory_space<vmem>>, vector<1x128xf32>
    %13 = vector.broadcast %12 : vector<1x128xf32> to vector<8x128xf32>
    %14 = arith.addf %11, %13 : vector<8x128xf32>
    %cst_11 = arith.constant 0.000000e+00 : f32
    %15 = vector.broadcast %cst_11 : f32 to vector<8x128xf32>
    %16 = arith.maximumf %14, %15 : vector<8x128xf32>
    %17 = tpu.iota {dimensions = array<i32: 1>} : vector<1x128xi32>
    %c50_i32 = arith.constant 50 : i32
    %18 = vector.broadcast %c50_i32 : i32 to vector<1x128xi32>
    %19 = arith.cmpi slt, %17, %18 : vector<1x128xi32>
    %cst_12 = arith.constant 0xFF800000 : f32
    %20 = vector.shape_cast %19 : vector<1x128xi1> to vector<1x128xi1>
    %21 = vector.broadcast %20 : vector<1x128xi1> to vector<8x128xi1>
    %22 = vector.broadcast %cst_12 : f32 to vector<8x128xf32>
    %23 = arith.select %21, %16, %22 : vector<8x128xi1>, vector<8x128xf32>
    %cst_13 = arith.constant dense<0xFF800000> : vector<8xf32>
    %24 = vector.multi_reduction <maximumf>, %23, %cst_13 [1] : vector<8x128xf32> to vector<8xf32>
    %25 = vector.shape_cast %24 : vector<8xf32> to vector<8x1xf32>
    %26 = vector.broadcast %25 : vector<8x1xf32> to vector<8x128xf32>
    %27 = arith.subf %23, %26 : vector<8x128xf32>
    %28 = math.exp %27 : vector<8x128xf32>
    %cst_14 = arith.constant dense<0.000000e+00> : vector<8xf32>
    %29 = vector.multi_reduction <add>, %28, %cst_14 [1] : vector<8x128xf32> to vector<8xf32>
    %30 = vector.shape_cast %29 : vector<8xf32> to vector<8x1xf32>
    %31 = math.log %30 : vector<8x1xf32>
    %32 = vector.broadcast %31 : vector<8x1xf32> to vector<8x128xf32>
    %33 = arith.subf %27, %32 : vector<8x128xf32>
    %cst_15 = arith.constant 0.000000e+00 : f32
    %34 = vector.shape_cast %19 : vector<1x128xi1> to vector<1x128xi1>
    %35 = vector.broadcast %34 : vector<1x128xi1> to vector<8x128xi1>
    %36 = vector.broadcast %cst_15 : f32 to vector<8x128xf32>
    %37 = arith.select %35, %33, %36 : vector<8x128xi1>, vector<8x128xf32>
    %c0_16 = arith.constant 0 : index
    %c0_17 = arith.constant 0 : index
    %38 = vector.load %arg6[%c0_16, %c0_17] : memref<8x128xf32, #tpu.memory_space<vmem>>, vector<8x128xf32>
    tpu.vector_store %arg6[%c0_16, %c0_17], %37 {strides = array<i32>} : memref<8x128xf32, #tpu.memory_space<vmem>>, vector<8x128xf32>,
    return
  }
  func.func @transform_0(%arg0: i32) -> (i32, i32) {
    %c0_i32 = arith.constant 0 : i32
    %c0_i32_0 = arith.constant 0 : i32
    return %arg0, %c0_i32 : i32, i32
  }
  func.func @transform_1(%arg0: i32) -> (i32, i32) {
    %c0_i32 = arith.constant 0 : i32
    %c0_i32_0 = arith.constant 0 : i32
    %c0_i32_1 = arith.constant 0 : i32
    return %c0_i32, %c0_i32_0 : i32, i32
  }
  func.func @transform_2(%arg0: i32) -> (i32, i32) {
    %c0_i32 = arith.constant 0 : i32
    %c0_i32_0 = arith.constant 0 : i32
    %c0_i32_1 = arith.constant 0 : i32
    return %c0_i32, %c0_i32_0 : i32, i32
  }
  func.func @transform_3(%arg0: i32) -> (i32, i32) {
    %c0_i32 = arith.constant 0 : i32
    %c0_i32_0 = arith.constant 0 : i32
    %c0_i32_1 = arith.constant 0 : i32
    return %c0_i32, %c0_i32_0 : i32, i32
  }
  func.func @transform_4(%arg0: i32) -> (i32, i32) {
    %c0_i32 = arith.constant 0 : i32
    %c0_i32_0 = arith.constant 0 : i32
    %c0_i32_1 = arith.constant 0 : i32
    return %c0_i32, %c0_i32_0 : i32, i32
  }
  func.func @transform_5(%arg0: i32) -> (i32, i32) {
    %c0_i32 = arith.constant 0 : i32
    %c0_i32_0 = arith.constant 0 : i32
    return %arg0, %c0_i32 : i32, i32
  }
}

</mosaic_0001>

<llo_original>
// kernel: tpu_custom_call.1
$region0: #{tpu_custom_call.1}
  #allocation0 [shape = 'u32[]', space=smem, size = 0x4, offset = 0x4, fixed_abs, tag = 'smem constant byte address 0x4 - core index']
  #allocation1 [shape = 'u32[72,128]{1,0:T(1,128)}', space=vmem, size = 0x9000, scoped, tag = 'internal scratch']
  %s0 = inlined_call_operand.hbm [shape: f32[2,1024], index: 0, kind: input, shape index: {}]
  %s1 = inlined_call_operand.hbm [shape: bf16[1024,128], index: 1, kind: input, shape index: {}]
  %s2 = inlined_call_operand.vmem [shape: f32[1,128], index: 2, kind: input, shape index: {}]
  %s3 = inlined_call_operand.hbm [shape: bf16[128,128], index: 3, kind: input, shape index: {}]
  %s4 = inlined_call_operand.vmem [shape: f32[1,128], index: 4, kind: input, shape index: {}]
  %s5 = inlined_call_operand.hbm [shape: f32[2,128], index: 5, kind: output, shape index: {}]
  %s6 = sld [smem:[#allocation0]]
  $region42: #{tpu_custom_call.1} parent=0
    _
  %s8 = ssub.s32 1, %s6
  %s9 = scalar_select 0, %s8, %s6
  $region1: #{tpu_custom_call.1} parent=0
    #allocation2 [shape = 'u8[32768]{0}', space=vmem, size = 0x8000, scoped, tag = 'input window, operand 0, single buffered']
    #allocation3 [shape = 's32[1]{0}', space=sflag, size = 0x4, scoped, tag = 'scoped memory for tpu_custom_call.1']
    #allocation4 [shape = 's32[1]{0}', space=sflag, size = 0x4, scoped, tag = 'scoped memory for tpu_custom_call.1']
    #allocation5 [shape = 'u8[262144]{0}', space=vmem, size = 0x40000, scoped, tag = 'input window, operand 1, single buffered']
    #allocation6 [shape = 's32[1]{0}', space=sflag, size = 0x4, scoped, tag = 'scoped memory for tpu_custom_call.1']
    #allocation7 [shape = 'u8[32768]{0}', space=vmem, size = 0x8000, scoped, tag = 'input window, operand 3, single buffered']
    #allocation8 [shape = 'u8[4096]{0}', space=vmem, size = 0x1000, scoped, tag = 'output window, operand 0, single buffered']
    %10 = vsyncpa [#allocation3], 0
    %11 = vsyncpa [#allocation6], 0
    %12 = vsyncpa [#allocation4], 0
    // Predicated region
    $region2: #{tpu_custom_call.1} parent=1 // pred_check
      _
    $region3: #{tpu_custom_call.1} parent=1 // pred_check_branch
      %14 = sbr.rel (0) target = $region5
    $region4: #{tpu_custom_call.1} parent=1 // pred_region
      %16 = vsyncadd [#allocation3], 768
      %s17 = sshll.u32 %s0, 4
      %s18 = int_to_ptr.hbm [resolvable:$true] %s17
      %s19 = sshll.u32 [#allocation2], 4
      %s20 = int_to_ptr.vmem [resolvable:$true] %s19
      %25 = dma.hbm_to_vmem [thread:$0]  %s18, 256, %s20, [#allocation3], 256, 256, 16
    $region5: #{tpu_custom_call.1} parent=1 // pred_fallthru
      _
    // Predicated region
    $region6: #{tpu_custom_call.1} parent=1 // pred_check
      _
    $region7: #{tpu_custom_call.1} parent=1 // pred_check_branch
      %27 = sbr.rel (0) target = $region9
    $region8: #{tpu_custom_call.1} parent=1 // pred_region
      %29 = vsyncadd [#allocation6], 0
      %s30 = sshll.u32 %s1, 4
      %s31 = int_to_ptr.hbm [resolvable:$true] %s30
      %s32 = sshll.u32 [#allocation5], 4
      %s33 = int_to_ptr.vmem [resolvable:$true] %s32
      %38 = dma.hbm_to_vmem [thread:$0]  %s31, 8192, %s33, [#allocation6], 64, 64, 4
    $region9: #{tpu_custom_call.1} parent=1 // pred_fallthru
      _
    // Predicated region
    $region10: #{tpu_custom_call.1} parent=1 // pred_check
      _
    $region11: #{tpu_custom_call.1} parent=1 // pred_check_branch
      %40 = sbr.rel (0) target = $region13
    $region12: #{tpu_custom_call.1} parent=1 // pred_region
      _
    $region13: #{tpu_custom_call.1} parent=1 // pred_fallthru
      _
    // Predicated region
    $region14: #{tpu_custom_call.1} parent=1 // pred_check
      _
    $region15: #{tpu_custom_call.1} parent=1 // pred_check_branch
      %42 = sbr.rel (0) target = $region17
    $region16: #{tpu_custom_call.1} parent=1 // pred_region
      %44 = vsyncadd [#allocation6], 0
      %s45 = sshll.u32 %s3, 4
      %s46 = int_to_ptr.hbm [resolvable:$true] %s45
      %s47 = sshll.u32 [#allocation7], 4
      %s48 = int_to_ptr.vmem [resolvable:$true] %s47
      %53 = dma.hbm_to_vmem [thread:$0]  %s46, 1024, %s48, [#allocation6], 64, 64, 4
    $region17: #{tpu_custom_call.1} parent=1 // pred_fallthru
      _
    // Predicated region
    $region18: #{tpu_custom_call.1} parent=1 // pred_check
      _
    $region19: #{tpu_custom_call.1} parent=1 // pred_check_branch
      %55 = sbr.rel (0) target = $region21
    $region20: #{tpu_custom_call.1} parent=1 // pred_region
      _
    $region21: #{tpu_custom_call.1} parent=1 // pred_fallthru
      _
    // Predicated region
    $region22: #{tpu_custom_call.1} parent=1 // pred_check
      _
    $region23: #{tpu_custom_call.1} parent=1 // pred_check_branch
      %57 = sbr.rel (0) target = $region25
    $region24: #{tpu_custom_call.1} parent=1 // pred_region
      %59 = dma.done [#allocation3], 1024
    $region25: #{tpu_custom_call.1} parent=1 // pred_fallthru
      _
    // Predicated region
    $region26: #{tpu_custom_call.1} parent=1 // pred_check
      _
    $region27: #{tpu_custom_call.1} parent=1 // pred_check_branch
      %61 = sbr.rel (0) target = $region29
    $region28: #{tpu_custom_call.1} parent=1 // pred_region
      %63 = dma.done [#allocation6], 8192
    $region29: #{tpu_custom_call.1} parent=1 // pred_fallthru
      _
    // Predicated region
    $region30: #{tpu_custom_call.1} parent=1 // pred_check
      _
    $region31: #{tpu_custom_call.1} parent=1 // pred_check_branch
      %65 = sbr.rel (0) target = $region33
    $region32: #{tpu_custom_call.1} parent=1 // pred_region
      %67 = dma.done [#allocation6], 1024
    $region33: #{tpu_custom_call.1} parent=1 // pred_fallthru
      _
    %v68 = vld [vmem:[#allocation2] sm:$0xff]
    %v69 = vld [vmem:[#allocation2 + $0x8] sm:$0xff]
    %v70 = vld [vmem:[#allocation2 + $0x10] sm:$0xff]
    %v71 = vld [vmem:[#allocation2 + $0x18] sm:$0xff]
    %v72 = vld [vmem:[#allocation2 + $0x20] sm:$0xff]
    %v73 = vld [vmem:[#allocation2 + $0x28] sm:$0xff]
    %v74 = vld [vmem:[#allocation2 + $0x30] sm:$0xff]
    %v75 = vld [vmem:[#allocation2 + $0x38] sm:$0xff]
    %84 = vst [vmem:[#allocation1] ss:$4 sm:$0xff] %v68
    %s85 = scalar_lea.vmem [#allocation1], 1
    %86 = vst [vmem:[%s85] ss:$4 sm:$0xff] %v70
    %s87 = scalar_lea.vmem [#allocation1], 2
    %88 = vst [vmem:[%s87] ss:$4 sm:$0xff] %v72
    %s89 = scalar_lea.vmem [#allocation1], 3
    %90 = vst [vmem:[%s89] ss:$4 sm:$0xff] %v74
    %s91 = scalar_lea.vmem [#allocation1], 32
    %92 = vst [vmem:[%s91] ss:$4 sm:$0xff] %v69
    %s93 = scalar_lea.vmem [#allocation1], 33
    %94 = vst [vmem:[%s93] ss:$4 sm:$0xff] %v71
    %s95 = scalar_lea.vmem [#allocation1], 34
    %96 = vst [vmem:[%s95] ss:$4 sm:$0xff] %v73
    %s97 = scalar_lea.vmem [#allocation1], 35
    %98 = vst [vmem:[%s97] ss:$4 sm:$0xff] %v75
    %v99 = vld.sshfl [vmem:[#allocation1] sm:$0xff pattern:$0x73625140]
    %v100 = vld.sshfl [vmem:[#allocation1 + $0x8] sm:$0xff pattern:$0x73625140]
    %v101 = vld.sshfl [vmem:[#allocation1 + $0x10] sm:$0xff pattern:$0x73625140]
    %v102 = vld.sshfl [vmem:[#allocation1 + $0x18] sm:$0xff pattern:$0x73625140]
    %v103 = vld.sshfl [vmem:[#allocation1 + $0x20] sm:$0xff pattern:$0x73625140]
    %v104 = vld.sshfl [vmem:[#allocation1 + $0x28] sm:$0xff pattern:$0x73625140]
    %v105 = vld.sshfl [vmem:[#allocation1 + $0x30] sm:$0xff pattern:$0x73625140]
    %v106 = vld.sshfl [vmem:[#allocation1 + $0x38] sm:$0xff pattern:$0x73625140]
    %v115 = vpack.c.bf16 %v99, %v99
    %v116 = vpack.c.bf16 %v100, %v100
    %v117 = vpack.c.bf16 %v101, %v101
    %v118 = vpack.c.bf16 %v102, %v102
    %v119 = vpack.c.bf16 %v103, %v103
    %v120 = vpack.c.bf16 %v104, %v104
    %v121 = vpack.c.bf16 %v105, %v105
    %v122 = vpack.c.bf16 %v106, %v106
    %v123 = vld [vmem:[#allocation5] sm:$0xf]
    %v124 = vld [vmem:[#allocation5 + $0x4] sm:$0xf]
    %v125 = vld [vmem:[#allocation5 + $0x8] sm:$0xf]
    %v126 = vld [vmem:[#allocation5 + $0xc] sm:$0xf]
    %v127 = vld [vmem:[#allocation5 + $0x10] sm:$0xf]
    %v128 = vld [vmem:[#allocation5 + $0x14] sm:$0xf]
    %v129 = vld [vmem:[#allocation5 + $0x18] sm:$0xf]
    %v130 = vld [vmem:[#allocation5 + $0x1c] sm:$0xf]
    %v131 = vld [vmem:[#allocation5 + $0x20] sm:$0xf]
    %v132 = vld [vmem:[#allocation5 + $0x24] sm:$0xf]
    %v133 = vld [vmem:[#allocation5 + $0x28] sm:$0xf]
    %v134 = vld [vmem:[#allocation5 + $0x2c] sm:$0xf]
    %v135 = vld [vmem:[#allocation5 + $0x30] sm:$0xf]
    %v136 = vld [vmem:[#allocation5 + $0x34] sm:$0xf]
    %v137 = vld [vmem:[#allocation5 + $0x38] sm:$0xf]
    %v138 = vld [vmem:[#allocation5 + $0x3c] sm:$0xf]
    %v139 = vld [vmem:[#allocation5 + $0x40] sm:$0xf]
    %v140 = vld [vmem:[#allocation5 + $0x44] sm:$0xf]
    %v141 = vld [vmem:[#allocation5 + $0x48] sm:$0xf]
    %v142 = vld [vmem:[#allocation5 + $0x4c] sm:$0xf]
    %v143 = vld [vmem:[#allocation5 + $0x50] sm:$0xf]
    %v144 = vld [vmem:[#allocation5 + $0x54] sm:$0xf]
    %v145 = vld [vmem:[#allocation5 + $0x58] sm:$0xf]
    %v146 = vld [vmem:[#allocation5 + $0x5c] sm:$0xf]
    %v147 = vld [vmem:[#allocation5 + $0x60] sm:$0xf]
    %v148 = vld [vmem:[#allocation5 + $0x64] sm:$0xf]
    %v149 = vld [vmem:[#allocation5 + $0x68] sm:$0xf]
    %v150 = vld [vmem:[#allocation5 + $0x6c] sm:$0xf]
    %v151 = vld [vmem:[#allocation5 + $0x70] sm:$0xf]
    %v152 = vld [vmem:[#allocation5 + $0x74] sm:$0xf]
    %v153 = vld [vmem:[#allocation5 + $0x78] sm:$0xf]
    %v154 = vld [vmem:[#allocation5 + $0x7c] sm:$0xf]
    %v155 = vld [vmem:[#allocation5 + $0x80] sm:$0xf]
    %v156 = vld [vmem:[#allocation5 + $0x84] sm:$0xf]
    %v157 = vld [vmem:[#allocation5 + $0x88] sm:$0xf]
    %v158 = vld [vmem:[#allocation5 + $0x8c] sm:$0xf]
    %v159 = vld [vmem:[#allocation5 + $0x90] sm:$0xf]
    %v160 = vld [vmem:[#allocation5 + $0x94] sm:$0xf]
    %v161 = vld [vmem:[#allocation5 + $0x98] sm:$0xf]
    %v162 = vld [vmem:[#allocation5 + $0x9c] sm:$0xf]
    %v163 = vld [vmem:[#allocation5 + $0xa0] sm:$0xf]
    %v164 = vld [vmem:[#allocation5 + $0xa4] sm:$0xf]
    %v165 = vld [vmem:[#allocation5 + $0xa8] sm:$0xf]
    %v166 = vld [vmem:[#allocation5 + $0xac] sm:$0xf]
    %v167 = vld [vmem:[#allocation5 + $0xb0] sm:$0xf]
    %v168 = vld [vmem:[#allocation5 + $0xb4] sm:$0xf]
    %v169 = vld [vmem:[#allocation5 + $0xb8] sm:$0xf]
    %v170 = vld [vmem:[#allocation5 + $0xbc] sm:$0xf]
    %v171 = vld [vmem:[#allocation5 + $0xc0] sm:$0xf]
    %v172 = vld [vmem:[#allocation5 + $0xc4] sm:$0xf]
    %v173 = vld [vmem:[#allocation5 + $0xc8] sm:$0xf]
    %v174 = vld [vmem:[#allocation5 + $0xcc] sm:$0xf]
    %v175 = vld [vmem:[#allocation5 + $0xd0] sm:$0xf]
    %v176 = vld [vmem:[#allocation5 + $0xd4] sm:$0xf]
    %v177 = vld [vmem:[#allocation5 + $0xd8] sm:$0xf]
    %v178 = vld [vmem:[#allocation5 + $0xdc] sm:$0xf]
    %v179 = vld [vmem:[#allocation5 + $0xe0] sm:$0xf]
    %v180 = vld [vmem:[#allocation5 + $0xe4] sm:$0xf]
    %v181 = vld [vmem:[#allocation5 + $0xe8] sm:$0xf]
    %v182 = vld [vmem:[#allocation5 + $0xec] sm:$0xf]
    %v183 = vld [vmem:[#allocation5 + $0xf0] sm:$0xf]
    %v184 = vld [vmem:[#allocation5 + $0xf4] sm:$0xf]
    %v185 = vld [vmem:[#allocation5 + $0xf8] sm:$0xf]
    %v186 = vld [vmem:[#allocation5 + $0xfc] sm:$0xf]
    %v187 = vld [vmem:[#allocation5 + $0x100] sm:$0xf]
    %v188 = vld [vmem:[#allocation5 + $0x104] sm:$0xf]
    %v189 = vld [vmem:[#allocation5 + $0x108] sm:$0xf]
    %v190 = vld [vmem:[#allocation5 + $0x10c] sm:$0xf]
    %v191 = vld [vmem:[#allocation5 + $0x110] sm:$0xf]
    %v192 = vld [vmem:[#allocation5 + $0x114] sm:$0xf]
    %v193 = vld [vmem:[#allocation5 + $0x118] sm:$0xf]
    %v194 = vld [vmem:[#allocation5 + $0x11c] sm:$0xf]
    %v195 = vld [vmem:[#allocation5 + $0x120] sm:$0xf]
    %v196 = vld [vmem:[#allocation5 + $0x124] sm:$0xf]
    %v197 = vld [vmem:[#allocation5 + $0x128] sm:$0xf]
    %v198 = vld [vmem:[#allocation5 + $0x12c] sm:$0xf]
    %v199 = vld [vmem:[#allocation5 + $0x130] sm:$0xf]
    %v200 = vld [vmem:[#allocation5 + $0x134] sm:$0xf]
    %v201 = vld [vmem:[#allocation5 + $0x138] sm:$0xf]
    %v202 = vld [vmem:[#allocation5 + $0x13c] sm:$0xf]
    %v203 = vld [vmem:[#allocation5 + $0x140] sm:$0xf]
    %v204 = vld [vmem:[#allocation5 + $0x144] sm:$0xf]
    %v205 = vld [vmem:[#allocation5 + $0x148] sm:$0xf]
    %v206 = vld [vmem:[#allocation5 + $0x14c] sm:$0xf]
    %v207 = vld [vmem:[#allocation5 + $0x150] sm:$0xf]
    %v208 = vld [vmem:[#allocation5 + $0x154] sm:$0xf]
    %v209 = vld [vmem:[#allocation5 + $0x158] sm:$0xf]
    %v210 = vld [vmem:[#allocation5 + $0x15c] sm:$0xf]
    %v211 = vld [vmem:[#allocation5 + $0x160] sm:$0xf]
    %v212 = vld [vmem:[#allocation5 + $0x164] sm:$0xf]
    %v213 = vld [vmem:[#allocation5 + $0x168] sm:$0xf]
    %v214 = vld [vmem:[#allocation5 + $0x16c] sm:$0xf]
    %v215 = vld [vmem:[#allocation5 + $0x170] sm:$0xf]
    %v216 = vld [vmem:[#allocation5 + $0x174] sm:$0xf]
    %v217 = vld [vmem:[#allocation5 + $0x178] sm:$0xf]
    %v218 = vld [vmem:[#allocation5 + $0x17c] sm:$0xf]
    %v219 = vld [vmem:[#allocation5 + $0x180] sm:$0xf]
    %v220 = vld [vmem:[#allocation5 + $0x184] sm:$0xf]
    %v221 = vld [vmem:[#allocation5 + $0x188] sm:$0xf]
    %v222 = vld [vmem:[#allocation5 + $0x18c] sm:$0xf]
    %v223 = vld [vmem:[#allocation5 + $0x190] sm:$0xf]
    %v224 = vld [vmem:[#allocation5 + $0x194] sm:$0xf]
    %v225 = vld [vmem:[#allocation5 + $0x198] sm:$0xf]
    %v226 = vld [vmem:[#allocation5 + $0x19c] sm:$0xf]
    %v227 = vld [vmem:[#allocation5 + $0x1a0] sm:$0xf]
    %v228 = vld [vmem:[#allocation5 + $0x1a4] sm:$0xf]
    %v229 = vld [vmem:[#allocation5 + $0x1a8] sm:$0xf]
    %v230 = vld [vmem:[#allocation5 + $0x1ac] sm:$0xf]
    %v231 = vld [vmem:[#allocation5 + $0x1b0] sm:$0xf]
    %v232 = vld [vmem:[#allocation5 + $0x1b4] sm:$0xf]
    %v233 = vld [vmem:[#allocation5 + $0x1b8] sm:$0xf]
    %v234 = vld [vmem:[#allocation5 + $0x1bc] sm:$0xf]
    %v235 = vld [vmem:[#allocation5 + $0x1c0] sm:$0xf]
    %v236 = vld [vmem:[#allocation5 + $0x1c4] sm:$0xf]
    %v237 = vld [vmem:[#allocation5 + $0x1c8] sm:$0xf]
    %v238 = vld [vmem:[#allocation5 + $0x1cc] sm:$0xf]
    %v239 = vld [vmem:[#allocation5 + $0x1d0] sm:$0xf]
    %v240 = vld [vmem:[#allocation5 + $0x1d4] sm:$0xf]
    %v241 = vld [vmem:[#allocation5 + $0x1d8] sm:$0xf]
    %v242 = vld [vmem:[#allocation5 + $0x1dc] sm:$0xf]
    %v243 = vld [vmem:[#allocation5 + $0x1e0] sm:$0xf]
    %v244 = vld [vmem:[#allocation5 + $0x1e4] sm:$0xf]
    %v245 = vld [vmem:[#allocation5 + $0x1e8] sm:$0xf]
    %v246 = vld [vmem:[#allocation5 + $0x1ec] sm:$0xf]
    %v247 = vld [vmem:[#allocation5 + $0x1f0] sm:$0xf]
    %v248 = vld [vmem:[#allocation5 + $0x1f4] sm:$0xf]
    %v249 = vld [vmem:[#allocation5 + $0x1f8] sm:$0xf]
    %v250 = vld [vmem:[#allocation5 + $0x1fc] sm:$0xf]
    %v251 = vld [vmem:[%s2] sm:$0x1]
    %v253 = vperm.slane %v251, 0
    %v383 = vunpack.c.l.b16 %v123
    %v384 = vunpack.c.l.b16 %v124
    %v385 = vunpack.c.l.b16 %v125
    %v386 = vunpack.c.l.b16 %v126
    %v387 = vunpack.c.l.b16 %v127
    %v388 = vunpack.c.l.b16 %v128
    %v389 = vunpack.c.l.b16 %v129
    %v390 = vunpack.c.l.b16 %v130
    %v391 = vunpack.c.l.b16 %v131
    %v392 = vunpack.c.l.b16 %v132
    %v393 = vunpack.c.l.b16 %v133
    %v394 = vunpack.c.l.b16 %v134
    %v395 = vunpack.c.l.b16 %v135
    %v396 = vunpack.c.l.b16 %v136
    %v397 = vunpack.c.l.b16 %v137
    %v398 = vunpack.c.l.b16 %v138
    %v399 = vunpack.c.l.b16 %v139
    %v400 = vunpack.c.l.b16 %v140
    %v401 = vunpack.c.l.b16 %v141
    %v402 = vunpack.c.l.b16 %v142
    %v403 = vunpack.c.l.b16 %v143
    %v404 = vunpack.c.l.b16 %v144
    %v405 = vunpack.c.l.b16 %v145
    %v406 = vunpack.c.l.b16 %v146
    %v407 = vunpack.c.l.b16 %v147
    %v408 = vunpack.c.l.b16 %v148
    %v409 = vunpack.c.l.b16 %v149
    %v410 = vunpack.c.l.b16 %v150
    %v411 = vunpack.c.l.b16 %v151
    %v412 = vunpack.c.l.b16 %v152
    %v413 = vunpack.c.l.b16 %v153
    %v414 = vunpack.c.l.b16 %v154
    %v415 = vunpack.c.l.b16 %v155
    %v416 = vunpack.c.l.b16 %v156
    %v417 = vunpack.c.l.b16 %v157
    %v418 = vunpack.c.l.b16 %v158
    %v419 = vunpack.c.l.b16 %v159
    %v420 = vunpack.c.l.b16 %v160
    %v421 = vunpack.c.l.b16 %v161
    %v422 = vunpack.c.l.b16 %v162
    %v423 = vunpack.c.l.b16 %v163
    %v424 = vunpack.c.l.b16 %v164
    %v425 = vunpack.c.l.b16 %v165
    %v426 = vunpack.c.l.b16 %v166
    %v427 = vunpack.c.l.b16 %v167
    %v428 = vunpack.c.l.b16 %v168
    %v429 = vunpack.c.l.b16 %v169
    %v430 = vunpack.c.l.b16 %v170
    %v431 = vunpack.c.l.b16 %v171
    %v432 = vunpack.c.l.b16 %v172
    %v433 = vunpack.c.l.b16 %v173
    %v434 = vunpack.c.l.b16 %v174
    %v435 = vunpack.c.l.b16 %v175
    %v436 = vunpack.c.l.b16 %v176
    %v437 = vunpack.c.l.b16 %v177
    %v438 = vunpack.c.l.b16 %v178
    %v439 = vunpack.c.l.b16 %v179
    %v440 = vunpack.c.l.b16 %v180
    %v441 = vunpack.c.l.b16 %v181
    %v442 = vunpack.c.l.b16 %v182
    %v443 = vunpack.c.l.b16 %v183
    %v444 = vunpack.c.l.b16 %v184
    %v445 = vunpack.c.l.b16 %v185
    %v446 = vunpack.c.l.b16 %v186
    %v447 = vunpack.c.l.b16 %v187
    %v448 = vunpack.c.l.b16 %v188
    %v449 = vunpack.c.l.b16 %v189
    %v450 = vunpack.c.l.b16 %v190
    %v451 = vunpack.c.l.b16 %v191
    %v452 = vunpack.c.l.b16 %v192
    %v453 = vunpack.c.l.b16 %v193
    %v454 = vunpack.c.l.b16 %v194
    %v455 = vunpack.c.l.b16 %v195
    %v456 = vunpack.c.l.b16 %v196
    %v457 = vunpack.c.l.b16 %v197
    %v458 = vunpack.c.l.b16 %v198
    %v459 = vunpack.c.l.b16 %v199
    %v460 = vunpack.c.l.b16 %v200
    %v461 = vunpack.c.l.b16 %v201
    %v462 = vunpack.c.l.b16 %v202
    %v463 = vunpack.c.l.b16 %v203
    %v464 = vunpack.c.l.b16 %v204
    %v465 = vunpack.c.l.b16 %v205
    %v466 = vunpack.c.l.b16 %v206
    %v467 = vunpack.c.l.b16 %v207
    %v468 = vunpack.c.l.b16 %v208
    %v469 = vunpack.c.l.b16 %v209
    %v470 = vunpack.c.l.b16 %v210
    %v471 = vunpack.c.l.b16 %v211
    %v472 = vunpack.c.l.b16 %v212
    %v473 = vunpack.c.l.b16 %v213
    %v474 = vunpack.c.l.b16 %v214
    %v475 = vunpack.c.l.b16 %v215
    %v476 = vunpack.c.l.b16 %v216
    %v477 = vunpack.c.l.b16 %v217
    %v478 = vunpack.c.l.b16 %v218
    %v479 = vunpack.c.l.b16 %v219
    %v480 = vunpack.c.l.b16 %v220
    %v481 = vunpack.c.l.b16 %v221
    %v482 = vunpack.c.l.b16 %v222
    %v483 = vunpack.c.l.b16 %v223
    %v484 = vunpack.c.l.b16 %v224
    %v485 = vunpack.c.l.b16 %v225
    %v486 = vunpack.c.l.b16 %v226
    %v487 = vunpack.c.l.b16 %v227
    %v488 = vunpack.c.l.b16 %v228
    %v489 = vunpack.c.l.b16 %v229
    %v490 = vunpack.c.l.b16 %v230
    %v491 = vunpack.c.l.b16 %v231
    %v492 = vunpack.c.l.b16 %v232
    %v493 = vunpack.c.l.b16 %v233
    %v494 = vunpack.c.l.b16 %v234
    %v495 = vunpack.c.l.b16 %v235
    %v496 = vunpack.c.l.b16 %v236
    %v497 = vunpack.c.l.b16 %v237
    %v498 = vunpack.c.l.b16 %v238
    %v499 = vunpack.c.l.b16 %v239
    %v500 = vunpack.c.l.b16 %v240
    %v501 = vunpack.c.l.b16 %v241
    %v502 = vunpack.c.l.b16 %v242
    %v503 = vunpack.c.l.b16 %v243
    %v504 = vunpack.c.l.b16 %v244
    %v505 = vunpack.c.l.b16 %v245
    %v506 = vunpack.c.l.b16 %v246
    %v507 = vunpack.c.l.b16 %v247
    %v508 = vunpack.c.l.b16 %v248
    %v509 = vunpack.c.l.b16 %v249
    %v510 = vunpack.c.l.b16 %v250
    %v511 = vpack.c.b16 %v384, %v383
    %v512 = vpack.c.b16 %v386, %v385
    %v513 = vpack.c.b16 %v388, %v387
    %v514 = vpack.c.b16 %v390, %v389
    %v515 = vpack.c.b16 %v392, %v391
    %v516 = vpack.c.b16 %v394, %v393
    %v517 = vpack.c.b16 %v396, %v395
    %v518 = vpack.c.b16 %v398, %v397
    %v519 = vpack.c.b16 %v400, %v399
    %v520 = vpack.c.b16 %v402, %v401
    %v521 = vpack.c.b16 %v404, %v403
    %v522 = vpack.c.b16 %v406, %v405
    %v523 = vpack.c.b16 %v408, %v407
    %v524 = vpack.c.b16 %v410, %v409
    %v525 = vpack.c.b16 %v412, %v411
    %v526 = vpack.c.b16 %v414, %v413
    %v527 = vpack.c.b16 %v416, %v415
    %v528 = vpack.c.b16 %v418, %v417
    %v529 = vpack.c.b16 %v420, %v419
    %v530 = vpack.c.b16 %v422, %v421
    %v531 = vpack.c.b16 %v424, %v423
    %v532 = vpack.c.b16 %v426, %v425
    %v533 = vpack.c.b16 %v428, %v427
    %v534 = vpack.c.b16 %v430, %v429
    %v535 = vpack.c.b16 %v432, %v431
    %v536 = vpack.c.b16 %v434, %v433
    %v537 = vpack.c.b16 %v436, %v435
    %v538 = vpack.c.b16 %v438, %v437
    %v539 = vpack.c.b16 %v440, %v439
    %v540 = vpack.c.b16 %v442, %v441
    %v541 = vpack.c.b16 %v444, %v443
    %v542 = vpack.c.b16 %v446, %v445
    %v543 = vpack.c.b16 %v448, %v447
    %v544 = vpack.c.b16 %v450, %v449
    %v545 = vpack.c.b16 %v452, %v451
    %v546 = vpack.c.b16 %v454, %v453
    %v547 = vpack.c.b16 %v456, %v455
    %v548 = vpack.c.b16 %v458, %v457
    %v549 = vpack.c.b16 %v460, %v459
    %v550 = vpack.c.b16 %v462, %v461
    %v551 = vpack.c.b16 %v464, %v463
    %v552 = vpack.c.b16 %v466, %v465
    %v553 = vpack.c.b16 %v468, %v467
    %v554 = vpack.c.b16 %v470, %v469
    %v555 = vpack.c.b16 %v472, %v471
    %v556 = vpack.c.b16 %v474, %v473
    %v557 = vpack.c.b16 %v476, %v475
    %v558 = vpack.c.b16 %v478, %v477
    %v559 = vpack.c.b16 %v480, %v479
    %v560 = vpack.c.b16 %v482, %v481
    %v561 = vpack.c.b16 %v484, %v483
    %v562 = vpack.c.b16 %v486, %v485
    %v563 = vpack.c.b16 %v488, %v487
    %v564 = vpack.c.b16 %v490, %v489
    %v565 = vpack.c.b16 %v492, %v491
    %v566 = vpack.c.b16 %v494, %v493
    %v567 = vpack.c.b16 %v496, %v495
    %v568 = vpack.c.b16 %v498, %v497
    %v569 = vpack.c.b16 %v500, %v499
    %v570 = vpack.c.b16 %v502, %v501
    %v571 = vpack.c.b16 %v504, %v503
    %v572 = vpack.c.b16 %v506, %v505
    %v573 = vpack.c.b16 %v508, %v507
    %v574 = vpack.c.b16 %v510, %v509
    %639 = vmatpush.bf16.msra.mxu0 %v518
    %640 = vmatpush.bf16.msra.mxu0 %v517
    %641 = vmatpush.bf16.msra.mxu0 %v516
    %642 = vmatpush.bf16.msra.mxu0 %v515
    %643 = vmatpush.bf16.msra.mxu0 %v514
    %644 = vmatpush.bf16.msra.mxu0 %v513
    %645 = vmatpush.bf16.msra.mxu0 %v512
    %646 = vmatpush.bf16.msra.mxu0 %v511
    %647 = vmatmul.bf16.gmra.mxu0 %v115
    %v648 = vpop.f32.mrf.mxu0
    %v649 = vadd.f32 %v253, %v648
    %v650 = vpop.f32.mrf.mxu0
    %651 = vdwg.mxu0
    %652 = vmatpush.bf16.msra.mxu0 %v526
    %653 = vmatpush.bf16.msra.mxu0 %v525
    %654 = vmatpush.bf16.msra.mxu0 %v524
    %655 = vmatpush.bf16.msra.mxu0 %v523
    %656 = vmatpush.bf16.msra.mxu0 %v522
    %657 = vmatpush.bf16.msra.mxu0 %v521
    %658 = vmatpush.bf16.msra.mxu0 %v520
    %659 = vmatpush.bf16.msra.mxu0 %v519
    %660 = vmatmul.bf16.gmra.mxu0 %v116
    %v661 = vpop.f32.mrf.mxu0
    %v662 = vadd.f32 %v649, %v661
    %v663 = vpop.f32.mrf.mxu0
    %664 = vdwg.mxu0
    %665 = vmatpush.bf16.msra.mxu0 %v534
    %666 = vmatpush.bf16.msra.mxu0 %v533
    %667 = vmatpush.bf16.msra.mxu0 %v532
    %668 = vmatpush.bf16.msra.mxu0 %v531
    %669 = vmatpush.bf16.msra.mxu0 %v530
    %670 = vmatpush.bf16.msra.mxu0 %v529
    %671 = vmatpush.bf16.msra.mxu0 %v528
    %672 = vmatpush.bf16.msra.mxu0 %v527
    %673 = vmatmul.bf16.gmra.mxu0 %v117
    %v674 = vpop.f32.mrf.mxu0
    %v675 = vadd.f32 %v662, %v674
    %v676 = vpop.f32.mrf.mxu0
    %677 = vdwg.mxu0
    %678 = vmatpush.bf16.msra.mxu0 %v542
    %679 = vmatpush.bf16.msra.mxu0 %v541
    %680 = vmatpush.bf16.msra.mxu0 %v540
    %681 = vmatpush.bf16.msra.mxu0 %v539
    %682 = vmatpush.bf16.msra.mxu0 %v538
    %683 = vmatpush.bf16.msra.mxu0 %v537
    %684 = vmatpush.bf16.msra.mxu0 %v536
    %685 = vmatpush.bf16.msra.mxu0 %v535
    %686 = vmatmul.bf16.gmra.mxu0 %v118
    %v687 = vpop.f32.mrf.mxu0
    %v688 = vadd.f32 %v675, %v687
    %v689 = vpop.f32.mrf.mxu0
    %690 = vdwg.mxu0
    %691 = vmatpush.bf16.msra.mxu0 %v550
    %692 = vmatpush.bf16.msra.mxu0 %v549
    %693 = vmatpush.bf16.msra.mxu0 %v548
    %694 = vmatpush.bf16.msra.mxu0 %v547
    %695 = vmatpush.bf16.msra.mxu0 %v546
    %696 = vmatpush.bf16.msra.mxu0 %v545
    %697 = vmatpush.bf16.msra.mxu0 %v544
    %698 = vmatpush.bf16.msra.mxu0 %v543
    %699 = vmatmul.bf16.gmra.mxu0 %v119
    %v700 = vpop.f32.mrf.mxu0
    %v701 = vadd.f32 %v688, %v700
    %v702 = vpop.f32.mrf.mxu0
    %703 = vdwg.mxu0
    %704 = vmatpush.bf16.msra.mxu0 %v558
    %705 = vmatpush.bf16.msra.mxu0 %v557
    %706 = vmatpush.bf16.msra.mxu0 %v556
    %707 = vmatpush.bf16.msra.mxu0 %v555
    %708 = vmatpush.bf16.msra.mxu0 %v554
    %709 = vmatpush.bf16.msra.mxu0 %v553
    %710 = vmatpush.bf16.msra.mxu0 %v552
    %711 = vmatpush.bf16.msra.mxu0 %v551
    %712 = vmatmul.bf16.gmra.mxu0 %v120
    %v713 = vpop.f32.mrf.mxu0
    %v714 = vadd.f32 %v701, %v713
    %v715 = vpop.f32.mrf.mxu0
    %716 = vdwg.mxu0
    %717 = vmatpush.bf16.msra.mxu0 %v566
    %718 = vmatpush.bf16.msra.mxu0 %v565
    %719 = vmatpush.bf16.msra.mxu0 %v564
    %720 = vmatpush.bf16.msra.mxu0 %v563
    %721 = vmatpush.bf16.msra.mxu0 %v562
    %722 = vmatpush.bf16.msra.mxu0 %v561
    %723 = vmatpush.bf16.msra.mxu0 %v560
    %724 = vmatpush.bf16.msra.mxu0 %v559
    %725 = vmatmul.bf16.gmra.mxu0 %v121
    %v726 = vpop.f32.mrf.mxu0
    %v727 = vadd.f32 %v714, %v726
    %v728 = vpop.f32.mrf.mxu0
    %729 = vdwg.mxu0
    %730 = vmatpush.bf16.msra.mxu0 %v574
    %731 = vmatpush.bf16.msra.mxu0 %v573
    %732 = vmatpush.bf16.msra.mxu0 %v572
    %733 = vmatpush.bf16.msra.mxu0 %v571
    %734 = vmatpush.bf16.msra.mxu0 %v570
    %735 = vmatpush.bf16.msra.mxu0 %v569
    %736 = vmatpush.bf16.msra.mxu0 %v568
    %737 = vmatpush.bf16.msra.mxu0 %v567
    %738 = vmatmul.bf16.gmra.mxu0 %v122
    %v739 = vpop.f32.mrf.mxu0
    %v740 = vadd.f32 %v727, %v739
    %v741 = vpop.f32.mrf.mxu0
    %742 = vdwg.mxu0
    %v743 = vmax.f32 %v740, 0.0
    %v744 = vpack.c.bf16 %v743, %v743
    %v745 = vld [vmem:[#allocation7] sm:$0xf]
    %v746 = vld [vmem:[#allocation7 + $0x4] sm:$0xf]
    %v747 = vld [vmem:[#allocation7 + $0x8] sm:$0xf]
    %v748 = vld [vmem:[#allocation7 + $0xc] sm:$0xf]
    %v749 = vld [vmem:[#allocation7 + $0x10] sm:$0xf]
    %v750 = vld [vmem:[#allocation7 + $0x14] sm:$0xf]
    %v751 = vld [vmem:[#allocation7 + $0x18] sm:$0xf]
    %v752 = vld [vmem:[#allocation7 + $0x1c] sm:$0xf]
    %v753 = vld [vmem:[#allocation7 + $0x20] sm:$0xf]
    %v754 = vld [vmem:[#allocation7 + $0x24] sm:$0xf]
    %v755 = vld [vmem:[#allocation7 + $0x28] sm:$0xf]
    %v756 = vld [vmem:[#allocation7 + $0x2c] sm:$0xf]
    %v757 = vld [vmem:[#allocation7 + $0x30] sm:$0xf]
    %v758 = vld [vmem:[#allocation7 + $0x34] sm:$0xf]
    %v759 = vld [vmem:[#allocation7 + $0x38] sm:$0xf]
    %v760 = vld [vmem:[#allocation7 + $0x3c] sm:$0xf]
    %v761 = vld [vmem:[%s4] sm:$0x1]
    %v763 = vperm.slane %v761, 0
    %v781 = vunpack.c.l.b16 %v745
    %v782 = vunpack.c.l.b16 %v746
    %v783 = vunpack.c.l.b16 %v747
    %v784 = vunpack.c.l.b16 %v748
    %v785 = vunpack.c.l.b16 %v749
    %v786 = vunpack.c.l.b16 %v750
    %v787 = vunpack.c.l.b16 %v751
    %v788 = vunpack.c.l.b16 %v752
    %v789 = vunpack.c.l.b16 %v753
    %v790 = vunpack.c.l.b16 %v754
    %v791 = vunpack.c.l.b16 %v755
    %v792 = vunpack.c.l.b16 %v756
    %v793 = vunpack.c.l.b16 %v757
    %v794 = vunpack.c.l.b16 %v758
    %v795 = vunpack.c.l.b16 %v759
    %v796 = vunpack.c.l.b16 %v760
    %v797 = vpack.c.b16 %v782, %v781
    %v798 = vpack.c.b16 %v784, %v783
    %v799 = vpack.c.b16 %v786, %v785
    %v800 = vpack.c.b16 %v788, %v787
    %v801 = vpack.c.b16 %v790, %v789
    %v802 = vpack.c.b16 %v792, %v791
    %v803 = vpack.c.b16 %v794, %v793
    %v804 = vpack.c.b16 %v796, %v795
    %813 = vmatpush.bf16.msra.mxu0 %v804
    %814 = vmatpush.bf16.msra.mxu0 %v803
    %815 = vmatpush.bf16.msra.mxu0 %v802
    %816 = vmatpush.bf16.msra.mxu0 %v801
    %817 = vmatpush.bf16.msra.mxu0 %v800
    %818 = vmatpush.bf16.msra.mxu0 %v799
    %819 = vmatpush.bf16.msra.mxu0 %v798
    %820 = vmatpush.bf16.msra.mxu0 %v797
    %821 = vmatmul.bf16.gmra.mxu0 %v744
    %v822 = vpop.f32.mrf.mxu0
    %v823 = vadd.f32 %v763, %v822
    %v824 = vpop.f32.mrf.mxu0
    %825 = vdwg.mxu0
    %v826 = vmax.f32 %v823, 0.0
    %v827 = vlaneseq
    %v828 = vand.u32 %v827, 127
    %vm829 = vcmp.lt.s32.totalorder %v828, 50
    %v830 = vsel %vm829, 1, 0
    %vm831 = vcmp.eq.s32.totalorder %v830, 1
    %v832 = vsel %vm831, %v826, -inf
    %833 = vmax.xlane.f32.xlu0 %v832
    %v834 = vpop.xlane.xlu0 %833
    %v835 = vsub.f32 %v832, %v834
    %v836 = vmul.f32 %v835, 1.442695
    %v837 = vpow.pop %v836
    %838 = vadd.xlane.f32.xlu0 %v837
    %v839 = vpop.xlane.xlu0 %838
    %v840 = vlog2.pop %v839
    %v841 = vmul.f32 %v840, 0.6931472
    %v842 = vsub.f32 %v835, %v841
    %v843 = vsel %vm831, %v842, 0.0
    %844 = vst [vmem:[#allocation8] sm:$0xff] %v843
    // Predicated region
    $region34: #{tpu_custom_call.1} parent=1 // pred_check
      _
    $region35: #{tpu_custom_call.1} parent=1 // pred_check_branch
      %846 = sbr.rel (0) target = $region37
    $region36: #{tpu_custom_call.1} parent=1 // pred_region
      %848 = vsyncadd [#allocation4], 96
      %s849 = sshll.u32 [#allocation8], 4
      %s850 = int_to_ptr.vmem [resolvable:$true] %s849
      %s851 = sshll.u32 %s5, 4
      %s852 = int_to_ptr.hbm [resolvable:$true] %s851
      %857 = dma.vmem_to_hbm [thread:$0]  %s850, 32, %s852, [#allocation4], 32, 32, 2
    $region37: #{tpu_custom_call.1} parent=1 // pred_fallthru
      _
    // Predicated region
    $region38: #{tpu_custom_call.1} parent=1 // pred_check
      _
    $region39: #{tpu_custom_call.1} parent=1 // pred_check_branch
      %859 = sbr.rel (0) target = $region41
    $region40: #{tpu_custom_call.1} parent=1 // pred_region
      %861 = dma.done [#allocation4], 128
    $region41: #{tpu_custom_call.1} parent=1 // pred_fallthru
      _
    %862 = vsyncpa [#allocation3], 1
    %863 = vsyncpa [#allocation6], 1
    %864 = vsyncpa [#allocation4], 1

</llo_original>
